<compile_context>
chip_gen: v6e
topology: v6e:2x2x1
jax: 0.10.0
libtpu: 0.0.40
codegen_flags: <defaults>
</compile_context>

<pallas_src>
import functools
import math

import jax
import jax.numpy as jnp
from jax.experimental import pallas as pl
from jax.experimental.pallas import tpu as pltpu


def _conv1d_gru_kernel(w_ref, b_ref, u_ref, o_ref, *, C_out, Cp, K, pad):
    """One grid step: both conv paths, all K taps, gates and blend fused.

    w_ref: (K, 4*Cp, C_tot)  per-tap fused gate weights (channel order [h; x]);
                             row blocks: r | z | n_i | n_h, each padded to Cp.
    b_ref: (4*Cp, 1)         fused gate biases (f32).
    u_ref: (C_tot, L)        [h_prev; x] activations, per-sample width halo,
                             batch folded into the lane axis.
    o_ref: (C_out, L)        next hidden state; only the first W lanes of each
                             sample's padded frame are valid (wrapper slices).
    """
    u = u_ref[...]
    L = u.shape[-1]

    g = jnp.zeros((4 * Cp, L), jnp.float32)
    h_prev = None
    for k in range(K):                                  # static unroll, K small
        if k == 0:
            uk = u
        else:
            # Lane-shift left by k: value at lane t becomes u[t + k].  The
            # wrapped tail only ever lands in per-sample halo lanes, which the
            # wrapper discards, so it never contaminates valid outputs.
            uk = jnp.concatenate([u[:, k:], u[:, :k]], axis=1)
        if k == pad:
            # The middle tap is exactly the unshifted h_prev at every valid
            # output lane -> no separate h_prev HBM stream is needed.
            h_prev = uk[:C_out, :].astype(jnp.float32)
        g = g + jnp.dot(w_ref[k], uk, preferred_element_type=jnp.float32)
    g = g + b_ref[...]                                  # (4*Cp,1) broadcast add

    r = jax.nn.sigmoid(g[:C_out])                       # rh + ri (+ biases)
    z = jax.nn.sigmoid(g[Cp:Cp + C_out])                # zh + zi (+ biases)
    n = jnp.tanh(g[2 * Cp:2 * Cp + C_out] + r * g[3 * Cp:3 * Cp + C_out])
    o_ref[...] = ((1.0 - z) * n + z * h_prev).astype(o_ref.dtype)


def conv1d_gru_cell(x, h_prev, w_i, b_i, w_h, b_h, *,
                    batch_block=None, compute_dtype=jnp.bfloat16,
                    out_dtype=None):
    """x: (N, C_in, W), h_prev: (N, C_out, W) -> h_next: (N, C_out, W)."""
    N, C_in, W = x.shape
    C_out = h_prev.shape[1]
    K = w_i.shape[-1]
    pad = K // 2
    Wp = W + 2 * pad                       # per-sample padded ("halo") width
    C_tot = C_in + C_out
    Cp = ((C_out + 7) // 8) * 8            # sublane-aligned gate row blocks

    dtype = jnp.dtype(compute_dtype if compute_dtype is not None else x.dtype)
    out_dtype = jnp.dtype(out_dtype if out_dtype is not None else x.dtype)

    # ---------------- generation-aware block sizing -------------------------
    try:
        vmem_cap = int(pltpu.get_tpu_info().vmem_capacity_bytes)
    except Exception:
        vmem_cap = 128 << 20
    budget = max(2 << 20, vmem_cap // 8)   # per-step payload target (~VMEM/8)
    act_b = dtype.itemsize
    out_b = out_dtype.itemsize
    bytes_per_lane = (
        2 * C_tot * act_b                  # double-buffered input block
        + K * C_tot * act_b                # in-kernel shifted copies
        + 2 * 4 * Cp * 4                   # f32 matmul result + accumulator
        + 4 * C_out * 4                    # r / z / n / recovered h_prev (f32)
        + 2 * C_out * out_b)               # double-buffered output block
    lanes_target = max(256, budget // bytes_per_lane)
    per128 = 128 // math.gcd(Wp, 128)      # samples per 128-lane-aligned unit

    if batch_block is not None:
        nb = max(1, min(int(batch_block), N))
        if nb < N:                         # multi-block: force legal tiling
            nb = max(per128, (nb // per128) * per128)
    else:
        nb = max(1, min(int(lanes_target // Wp), N))
        if nb >= N:
            # Whole batch fits one block.  Prefer >=2 big, 128-lane-aligned
            # blocks when possible so both v7x TensorCores get work.
            half = ((((N + 1) // 2) + per128 - 1) // per128) * per128
            nb = half if (half < N and half * Wp >= 1024) else N
        else:
            nb = max(per128, (nb // per128) * per128)
    nb = min(nb, N)
    n_blocks = -(-N // nb)
    N_pad = n_blocks * nb
    L = nb * Wp

    # ---------------- wrapper-side layout (plain JAX, fused by XLA) ---------
    # [h_prev; x] stacked on channels, zero halo of `pad` per sample (so taps
    # never leak across samples), batch folded into the lane axis.
    u = jnp.concatenate([h_prev, x], axis=1)                    # (N, C_tot, W)
    u = jnp.pad(u, ((0, N_pad - N), (0, 0), (pad, pad)))        # (N_pad, C_tot, Wp)
    u = jnp.transpose(u, (1, 0, 2)).reshape(C_tot, N_pad * Wp).astype(dtype)

    # Per-tap fused gate weights, channel order [h; x]; each gate row block is
    # padded to Cp rows so the in-kernel gate split is sublane aligned.
    wi_r, wi_z, wi_n = w_i[:C_out], w_i[C_out:2 * C_out], w_i[2 * C_out:]
    wh_r, wh_z, wh_n = w_h[:C_out], w_h[C_out:2 * C_out], w_h[2 * C_out:]

    def _gate(wh_part, wi_part):
        blk = jnp.concatenate([wh_part, wi_part], axis=1)       # (C_out, C_tot, K)
        return jnp.pad(blk, ((0, Cp - C_out), (0, 0), (0, 0)))

    w_all = jnp.concatenate([
        _gate(wh_r, wi_r),                        # r   : h2h_r | i2h_r
        _gate(wh_z, wi_z),                        # z   : h2h_z | i2h_z
        _gate(jnp.zeros_like(wh_n), wi_n),        # n_i : i2h_n only
        _gate(wh_n, jnp.zeros_like(wi_n)),        # n_h : h2h_n only
    ], axis=0)                                                   # (4*Cp, C_tot, K)
    w3 = jnp.transpose(w_all, (2, 0, 1)).astype(dtype)           # (K, 4*Cp, C_tot)

    def _bias(v):
        return jnp.pad(v, (0, Cp - C_out))

    b_col = jnp.concatenate([
        _bias(b_i[:C_out] + b_h[:C_out]),
        _bias(b_i[C_out:2 * C_out] + b_h[C_out:2 * C_out]),
        _bias(b_i[2 * C_out:]),
        _bias(b_h[2 * C_out:]),
    ])[:, None].astype(jnp.float32)                              # (4*Cp, 1)

    kernel = functools.partial(_conv1d_gru_kernel,
                               C_out=C_out, Cp=Cp, K=K, pad=pad)

    out = pl.pallas_call(
        kernel,
        out_shape=jax.ShapeDtypeStruct((C_out, N_pad * Wp), out_dtype),
        grid_spec=pltpu.PrefetchScalarGridSpec(
            num_scalar_prefetch=0,
            grid=(n_blocks,),
            in_specs=[
                pl.BlockSpec((K, 4 * Cp, C_tot), lambda i: (0, 0, 0)),  # resident
                pl.BlockSpec((4 * Cp, 1), lambda i: (0, 0)),            # resident
                pl.BlockSpec((C_tot, L), lambda i: (0, i)),
            ],
            out_specs=pl.BlockSpec((C_out, L), lambda i: (0, i)),
        ),
        compiler_params=pltpu.CompilerParams(
            dimension_semantics=("parallel",),
            vmem_limit_bytes=int(vmem_cap * 3 // 4),
        ),
    )(w3, b_col, u)

    # Drop per-sample halo lanes and batch padding; back to (N, C_out, W).
    out = out.reshape(C_out, N_pad, Wp)[:, :N, :W]
    return jnp.transpose(out, (1, 0, 2))


def _reference(x, h_prev, w_i, b_i, w_h, b_h):
    """Pure-JAX reference mirroring the PyTorch module (cross-correlation)."""
    pad = w_i.shape[-1] // 2
    dn = ("NCH", "OIH", "NCH")
    rzn_i = jax.lax.conv_general_dilated(
        x, w_i, (1,), [(pad, pad)], dimension_numbers=dn) + b_i[None, :, None]
    rzn_h = jax.lax.conv_general_dilated(
        h_prev, w_h, (1,), [(pad, pad)], dimension_numbers=dn) + b_h[None, :, None]
    C = h_prev.shape[1]
    ri, zi, ni = rzn_i[:, :C], rzn_i[:, C:2 * C], rzn_i[:, 2 * C:]
    rh, zh, nh = rzn_h[:, :C], rzn_h[:, C:2 * C], rzn_h[:, 2 * C:]
    n = jnp.tanh(ni + jax.nn.sigmoid(ri + rh) * nh)
    z = jax.nn.sigmoid(zi + zh)
    return (1.0 - z) * n + z * h_prev


if __name__ == "__main__":
    # Module hyperparameters (small shapes consistent with the forward pass).
    dim_in = 16          # W (spatial width)
    in_channels = 4      # C_in
    out_channels = 8     # C_hidden
    kernel_size = 3
    batch = 2

    key = jax.random.PRNGKey(0)
    k_x, k_h, k_wi, k_bi, k_wh, k_bh = jax.random.split(key, 6)

    x = jax.random.normal(k_x, (batch, in_channels, dim_in), jnp.float32)
    h_prev = jax.random.normal(k_h, (batch, out_channels, dim_in), jnp.float32)

    w_i = 0.1 * jax.random.normal(
        k_wi, (out_channels * 3, in_channels, kernel_size), jnp.float32)
    b_i = 0.1 * jax.random.normal(k_bi, (out_channels * 3,), jnp.float32)
    w_h = 0.1 * jax.random.normal(
        k_wh, (out_channels * 3, out_channels, kernel_size), jnp.float32)
    b_h = 0.1 * jax.random.normal(k_bh, (out_channels * 3,), jnp.float32)

    h_ref = _reference(x, h_prev, w_i, b_i, w_h, b_h)

    # Exactness check with an f32 MXU stream.
    h_f32 = conv1d_gru_cell(x, h_prev, w_i, b_i, w_h, b_h,
                            compute_dtype=jnp.float32)
    jax.block_until_ready(h_f32)
    assert h_f32.shape == (batch, out_channels, dim_in)
    assert jnp.allclose(h_f32, h_ref, atol=2e-5, rtol=2e-5)

    # Default path: bf16 MXU/DMA streams, f32 accumulation + f32 state write.
    h_bf16 = conv1d_gru_cell(x, h_prev, w_i, b_i, w_h, b_h)
    jax.block_until_ready(h_bf16)
    assert h_bf16.shape == (batch, out_channels, dim_in)
    assert jnp.allclose(h_bf16, h_ref, atol=5e-2, rtol=5e-2)

    print("KERNEL_OK")
</pallas_src>

<mosaic_0001>
module attributes {stable_mosaic.version = 11 : i64} {
  func.func @_conv1d_gru_kernel(%arg0: i32, %arg1: memref<3x32x12xf32, #tpu.memory_space<vmem>>, %arg2: memref<32x1xf32, #tpu.memory_space<vmem>>, %arg3: memref<12x36xf32, #tpu.memory_space<vmem>>, %arg4: memref<8x36xf32, #tpu.memory_space<vmem>>) attributes {dimension_semantics = [#tpu.dimension_semantics<parallel>], iteration_bounds = array<i64: 1>, scalar_prefetch = 0 : i64, scratch_operands = 0 : i64, tpu.core_type = #tpu.core_type<tc>, window_params = [{pipeline_mode = #tpu.pipeline_mode<synchronous>, transform_indices = @transform_0, window_bounds = array<i64: 3, 32, 12>}, {pipeline_mode = #tpu.pipeline_mode<synchronous>, transform_indices = @transform_1, window_bounds = array<i64: 32, 1>}, {transform_indices = @transform_2, window_bounds = array<i64: 12, 36>}, {transform_indices = @transform_3, window_bounds = array<i64: 8, 36>}]} {
    %c0 = arith.constant 0 : index
    %c0_0 = arith.constant 0 : index
    %0 = vector.load %arg3[%c0, %c0_0] : memref<12x36xf32, #tpu.memory_space<vmem>>, vector<12x36xf32>
    %cst = arith.constant 0.000000e+00 : f32
    %1 = vector.broadcast %cst : f32 to vector<32x36xf32>
    %c0_1 = arith.constant 0 : index
    %c0_2 = arith.constant 0 : index
    %c0_3 = arith.constant 0 : index
    %2 = vector.load %arg1[%c0_1, %c0_2, %c0_3] : memref<3x32x12xf32, #tpu.memory_space<vmem>>, vector<1x32x12xf32>
    %3 = vector.shape_cast %2 : vector<1x32x12xf32> to vector<32x12xf32>
    %cst_4 = arith.constant dense<0.000000e+00> : vector<32x36xf32>
    %4 = tpu.matmul %3, %0, %cst_4 {dimension_numbers = #tpu.dot_dimension_numbers<[1], [0], [0], [1], [0, 0, 1, 1], [], []>} : vector<32x12xf32>, vector<12x36xf32>, vector<32x36xf32> -> vector<32x36xf32>
    %5 = arith.addf %1, %4 : vector<32x36xf32>
    %6 = vector.extract_strided_slice %0 {offsets = [0, 1], sizes = [12, 35], strides = [1, 1]} : vector<12x36xf32> to vector<12x35xf32>
    %7 = vector.extract_strided_slice %0 {offsets = [0, 0], sizes = [12, 1], strides = [1, 1]} : vector<12x36xf32> to vector<12x1xf32>
    %8 = tpu.concatenate %6, %7 in 1 : vector<12x35xf32>, vector<12x1xf32> -> vector<12x36xf32>
    %9 = vector.extract_strided_slice %8 {offsets = [0, 0], sizes = [8, 36], strides = [1, 1]} : vector<12x36xf32> to vector<8x36xf32>
    %c1 = arith.constant 1 : index
    %c0_5 = arith.constant 0 : index
    %c0_6 = arith.constant 0 : index
    %10 = vector.load %arg1[%c1, %c0_5, %c0_6] : memref<3x32x12xf32, #tpu.memory_space<vmem>>, vector<1x32x12xf32>
    %11 = vector.shape_cast %10 : vector<1x32x12xf32> to vector<32x12xf32>
    %cst_7 = arith.constant dense<0.000000e+00> : vector<32x36xf32>
    %12 = tpu.matmul %11, %8, %cst_7 {dimension_numbers = #tpu.dot_dimension_numbers<[1], [0], [0], [1], [0, 0, 1, 1], [], []>} : vector<32x12xf32>, vector<12x36xf32>, vector<32x36xf32> -> vector<32x36xf32>
    %13 = arith.addf %5, %12 : vector<32x36xf32>
    %14 = vector.extract_strided_slice %0 {offsets = [0, 2], sizes = [12, 34], strides = [1, 1]} : vector<12x36xf32> to vector<12x34xf32>
    %15 = vector.extract_strided_slice %0 {offsets = [0, 0], sizes = [12, 2], strides = [1, 1]} : vector<12x36xf32> to vector<12x2xf32>
    %16 = tpu.concatenate %14, %15 in 1 : vector<12x34xf32>, vector<12x2xf32> -> vector<12x36xf32>
    %c2 = arith.constant 2 : index
    %c0_8 = arith.constant 0 : index
    %c0_9 = arith.constant 0 : index
    %17 = vector.load %arg1[%c2, %c0_8, %c0_9] : memref<3x32x12xf32, #tpu.memory_space<vmem>>, vector<1x32x12xf32>
    %18 = vector.shape_cast %17 : vector<1x32x12xf32> to vector<32x12xf32>
    %cst_10 = arith.constant dense<0.000000e+00> : vector<32x36xf32>
    %19 = tpu.matmul %18, %16, %cst_10 {dimension_numbers = #tpu.dot_dimension_numbers<[1], [0], [0], [1], [0, 0, 1, 1], [], []>} : vector<32x12xf32>, vector<12x36xf32>, vector<32x36xf32> -> vector<32x36xf32>
    %20 = arith.addf %13, %19 : vector<32x36xf32>
    %c0_11 = arith.constant 0 : index
    %c0_12 = arith.constant 0 : index
    %21 = vector.load %arg2[%c0_11, %c0_12] : memref<32x1xf32, #tpu.memory_space<vmem>>, vector<32x1xf32>
    %22 = vector.broadcast %21 : vector<32x1xf32> to vector<32x36xf32>
    %23 = arith.addf %20, %22 : vector<32x36xf32>
    %24 = vector.extract_strided_slice %23 {offsets = [0, 0], sizes = [8, 36], strides = [1, 1]} : vector<32x36xf32> to vector<8x36xf32>
    %25 = arith.negf %24 : vector<8x36xf32>
    %26 = math.exp %25 : vector<8x36xf32>
    %cst_13 = arith.constant 1.000000e+00 : f32
    %27 = vector.broadcast %cst_13 : f32 to vector<8x36xf32>
    %28 = arith.addf %27, %26 : vector<8x36xf32>
    %29 = arith.divf %27, %28 : vector<8x36xf32>
    %30 = vector.extract_strided_slice %23 {offsets = [8, 0], sizes = [8, 36], strides = [1, 1]} : vector<32x36xf32> to vector<8x36xf32>
    %31 = arith.negf %30 : vector<8x36xf32>
    %32 = math.exp %31 : vector<8x36xf32>
    %cst_14 = arith.constant 1.000000e+00 : f32
    %33 = vector.broadcast %cst_14 : f32 to vector<8x36xf32>
    %34 = arith.addf %33, %32 : vector<8x36xf32>
    %35 = arith.divf %33, %34 : vector<8x36xf32>
    %36 = vector.extract_strided_slice %23 {offsets = [16, 0], sizes = [8, 36], strides = [1, 1]} : vector<32x36xf32> to vector<8x36xf32>
    %37 = vector.extract_strided_slice %23 {offsets = [24, 0], sizes = [8, 36], strides = [1, 1]} : vector<32x36xf32> to vector<8x36xf32>
    %38 = arith.mulf %29, %37 : vector<8x36xf32>
    %39 = arith.addf %36, %38 : vector<8x36xf32>
    %40 = math.tanh %39 : vector<8x36xf32>
    %cst_15 = arith.constant 1.000000e+00 : f32
    %41 = vector.broadcast %cst_15 : f32 to vector<8x36xf32>
    %42 = arith.subf %41, %35 : vector<8x36xf32>
    %43 = arith.mulf %42, %40 : vector<8x36xf32>
    %44 = arith.mulf %35, %9 : vector<8x36xf32>
    %45 = arith.addf %43, %44 : vector<8x36xf32>
    %c0_16 = arith.constant 0 : index
    %c0_17 = arith.constant 0 : index
    %46 = vector.load %arg4[%c0_16, %c0_17] : memref<8x36xf32, #tpu.memory_space<vmem>>, vector<8x36xf32>
    tpu.vector_store %arg4[%c0_16, %c0_17], %45 {strides = array<i32>} : memref<8x36xf32, #tpu.memory_space<vmem>>, vector<8x36xf32>,
    return
  }
  func.func @transform_0(%arg0: i32) -> (i32, i32, i32) {
    %c0_i32 = arith.constant 0 : i32
    %c0_i32_0 = arith.constant 0 : i32
    %c0_i32_1 = arith.constant 0 : i32
    %c0_i32_2 = arith.constant 0 : i32
    return %c0_i32, %c0_i32_0, %c0_i32_1 : i32, i32, i32
  }
  func.func @transform_1(%arg0: i32) -> (i32, i32) {
    %c0_i32 = arith.constant 0 : i32
    %c0_i32_0 = arith.constant 0 : i32
    %c0_i32_1 = arith.constant 0 : i32
    return %c0_i32, %c0_i32_0 : i32, i32
  }
  func.func @transform_2(%arg0: i32) -> (i32, i32) {
    %c0_i32 = arith.constant 0 : i32
    %c0_i32_0 = arith.constant 0 : i32
    return %c0_i32, %arg0 : i32, i32
  }
  func.func @transform_3(%arg0: i32) -> (i32, i32) {
    %c0_i32 = arith.constant 0 : i32
    %c0_i32_0 = arith.constant 0 : i32
    return %c0_i32, %arg0 : i32, i32
  }
}

</mosaic_0001>

<llo_original>
// kernel: tpu_custom_call.1
$region0: #{tpu_custom_call.1}
  #allocation0 [shape = 'u32[]', space=smem, size = 0x4, offset = 0x4, fixed_abs, tag = 'smem constant byte address 0x4 - core index']
  #allocation1 [shape = 'u32[144,128]{1,0:T(1,128)}', space=vmem, size = 0x12000, scoped, tag = 'internal scratch']
  %s0 = inlined_call_operand.vmem [shape: f32[3,32,12], index: 0, kind: input, shape index: {}]
  %s1 = inlined_call_operand.vmem [shape: f32[32,1], index: 1, kind: input, shape index: {}]
  %s2 = inlined_call_operand.vmem [shape: f32[12,36], index: 2, kind: input, shape index: {}]
  %s3 = inlined_call_operand.hbm [shape: f32[8,36], index: 3, kind: output, shape index: {}]
  %s4 = sld [smem:[#allocation0]]
  $region22: #{tpu_custom_call.1} parent=0
    _
  %s6 = ssub.s32 1, %s4
  %s7 = scalar_select 0, %s6, %s4
  $region1: #{tpu_custom_call.1} parent=0
    #allocation2 [shape = 'u8[4096]{0}', space=vmem, size = 0x1000, scoped, tag = 'output window, operand 0, single buffered']
    #allocation3 [shape = 's32[1]{0}', space=sflag, size = 0x4, scoped, tag = 'scoped memory for tpu_custom_call.1']
    %8 = vsyncpa [#allocation3], 0
    // Predicated region
    $region2: #{tpu_custom_call.1} parent=1 // pred_check
      _
    $region3: #{tpu_custom_call.1} parent=1 // pred_check_branch
      %10 = sbr.rel (0) target = $region5
    $region4: #{tpu_custom_call.1} parent=1 // pred_region
      _
    $region5: #{tpu_custom_call.1} parent=1 // pred_fallthru
      _
    // Predicated region
    $region6: #{tpu_custom_call.1} parent=1 // pred_check
      _
    $region7: #{tpu_custom_call.1} parent=1 // pred_check_branch
      %12 = sbr.rel (0) target = $region9
    $region8: #{tpu_custom_call.1} parent=1 // pred_region
      _
    $region9: #{tpu_custom_call.1} parent=1 // pred_fallthru
      _
    // Predicated region
    $region10: #{tpu_custom_call.1} parent=1 // pred_check
      _
    $region11: #{tpu_custom_call.1} parent=1 // pred_check_branch
      %14 = sbr.rel (0) target = $region13
    $region12: #{tpu_custom_call.1} parent=1 // pred_region
      _
    $region13: #{tpu_custom_call.1} parent=1 // pred_fallthru
      _
    %v15 = vld [vmem:[%s2] sm:$0xff]
    %v16 = vld [vmem:[%s2 + $0x8] sm:$0xf]
    %v17 = vld [vmem:[%s0] sm:$0xff]
    %v18 = vld [vmem:[%s0 + $0x8] sm:$0xff]
    %v19 = vld [vmem:[%s0 + $0x10] sm:$0xff]
    %v20 = vld [vmem:[%s0 + $0x18] sm:$0xff]
    %23 = vrot.lane.b32.xlu0 %v15, 127
    %v24 = vpop.permute.xlu0 %23
    %25 = vrot.lane.b32.xlu0 %v16, 127
    %v26 = vpop.permute.xlu0 %25
    %29 = vrot.lane.b32.xlu0 %v15, 35
    %v30 = vpop.permute.xlu0 %29
    %31 = vrot.lane.b32.xlu0 %v16, 35
    %v32 = vpop.permute.xlu0 %31
    %vm35 = vcmask 285696
    %v36 = vsel %vm35, %v24, %v30
    %v37 = vsel %vm35, %v26, %v32
    %s38 = scalar_lea.vmem %s0, 32
    %v39 = vld [vmem:[%s38] sm:$0xff]
    %v40 = vld [vmem:[%s38 + $0x8] sm:$0xff]
    %v41 = vld [vmem:[%s38 + $0x10] sm:$0xff]
    %v42 = vld [vmem:[%s38 + $0x18] sm:$0xff]
    %vm43 = vcmask 97280
    %v45 = vsel %vm43, %v39, 0
    %v48 = vsel %vm43, %v40, 0
    %v51 = vsel %vm43, %v41, 0
    %v54 = vsel %vm43, %v42, 0
    %vm56 = vcmask 1043456
    %v58 = vsel %vm56, %v37, 0
    %60 = vmatprep.subr.mxu0 0.0
    %61 = vmatpush1.msra.mxu0 0.0
    %62 = vmatprep.subr.mxu0 0.0
    %63 = vmatpush1.msra.mxu0 0.0
    %64 = vmatprep.subr.mxu0 0.0
    %65 = vmatpush1.msra.mxu0 0.0
    %66 = vmatprep.subr.mxu0 0.0
    %67 = vmatpush1.msra.mxu0 0.0
    %68 = vmatprep.subr.mxu0 0.0
    %69 = vmatpush1.msra.mxu0 0.0
    %70 = vmatprep.subr.mxu0 0.0
    %71 = vmatpush1.msra.mxu0 0.0
    %72 = vmatprep.subr.mxu0 0.0
    %73 = vmatpush1.msra.mxu0 0.0
    %74 = vmatprep.subr.mxu0 0.0
    %75 = vmatpush1.msra.mxu0 0.0
    %76 = vmatprep.subr.mxu0 0.0
    %77 = vmatpush1.msra.mxu0 0.0
    %78 = vmatprep.subr.mxu0 0.0
    %79 = vmatpush1.msra.mxu0 0.0
    %80 = vmatprep.subr.mxu0 0.0
    %81 = vmatpush1.msra.mxu0 0.0
    %82 = vmatprep.subr.mxu0 0.0
    %83 = vmatpush1.msra.mxu0 0.0
    %84 = vmatprep.subr.mxu0 0.0
    %85 = vmatpush1.msra.mxu0 0.0
    %86 = vmatprep.subr.mxu0 0.0
    %87 = vmatpush1.msra.mxu0 0.0
    %88 = vmatprep.subr.mxu0 0.0
    %89 = vmatpush1.msra.mxu0 %v58
    %90 = vmatprep.subr.mxu0 0.0
    %91 = vmatpush1.msra.mxu0 %v36
    %92 = vmatprep.subr.mxu0 0.0
    %93 = vmatpush2.msra.mxu0 0.0
    %94 = vmatprep.subr.mxu0 0.0
    %95 = vmatpush2.msra.mxu0 0.0
    %96 = vmatprep.subr.mxu0 0.0
    %97 = vmatpush2.msra.mxu0 0.0
    %98 = vmatprep.subr.mxu0 0.0
    %99 = vmatpush2.msra.mxu0 0.0
    %100 = vmatprep.subr.mxu0 0.0
    %101 = vmatpush2.msra.mxu0 0.0
    %102 = vmatprep.subr.mxu0 0.0
    %103 = vmatpush2.msra.mxu0 0.0
    %104 = vmatprep.subr.mxu0 0.0
    %105 = vmatpush2.msra.mxu0 0.0
    %106 = vmatprep.subr.mxu0 0.0
    %107 = vmatpush2.msra.mxu0 0.0
    %108 = vmatprep.subr.mxu0 0.0
    %109 = vmatpush2.msra.mxu0 0.0
    %110 = vmatprep.subr.mxu0 0.0
    %111 = vmatpush2.msra.mxu0 0.0
    %112 = vmatprep.subr.mxu0 0.0
    %113 = vmatpush2.msra.mxu0 0.0
    %114 = vmatprep.subr.mxu0 0.0
    %115 = vmatpush2.msra.mxu0 0.0
    %116 = vmatprep.subr.mxu0 0.0
    %117 = vmatpush2.msra.mxu0 0.0
    %118 = vmatprep.subr.mxu0 0.0
    %119 = vmatpush2.msra.mxu0 0.0
    %120 = vmatprep.subr.mxu0 0.0
    %121 = vmatpush2.msra.mxu0 0.0
    %122 = vmatprep.subr.mxu0 0.0
    %123 = vmatpush2.msra.mxu0 0.0
    %124 = vmatprep.mubr.f32.mxu0 0.0
    %125 = vmatmul.mubr.f32.gmra.mxu0 %v45
    %v126 = vpop.f32.mrf.mxu0
    %v127 = vadd.f32 0.0, %v126
    %v128 = vpop.f32.mrf.mxu0
    %129 = vmatprep.mubr.f32.mxu0 0.0
    %130 = vmatmul.mubr.f32.gmra.mxu0 %v48
    %v131 = vpop.f32.mrf.mxu0
    %v132 = vadd.f32 0.0, %v131
    %v133 = vpop.f32.mrf.mxu0
    %134 = vmatprep.mubr.f32.mxu0 0.0
    %135 = vmatmul.mubr.f32.gmra.mxu0 %v51
    %v136 = vpop.f32.mrf.mxu0
    %v137 = vadd.f32 0.0, %v136
    %v138 = vpop.f32.mrf.mxu0
    %139 = vmatprep.mubr.f32.mxu0 0.0
    %140 = vmatmul.mubr.f32.gmra.mxu0 %v54
    %v141 = vpop.f32.mrf.mxu0
    %v142 = vadd.f32 0.0, %v141
    %v143 = vpop.f32.mrf.mxu0
    %144 = vdwg.mxu0
    %v146 = vsel %vm43, %v17, 0
    %v149 = vsel %vm43, %v18, 0
    %v152 = vsel %vm43, %v19, 0
    %v155 = vsel %vm43, %v20, 0
    %v157 = vsel %vm56, %v16, 0
    %159 = vmatprep.subr.mxu0 0.0
    %160 = vmatpush1.msra.mxu0 0.0
    %161 = vmatprep.subr.mxu0 0.0
    %162 = vmatpush1.msra.mxu0 0.0
    %163 = vmatprep.subr.mxu0 0.0
    %164 = vmatpush1.msra.mxu0 0.0
    %165 = vmatprep.subr.mxu0 0.0
    %166 = vmatpush1.msra.mxu0 0.0
    %167 = vmatprep.subr.mxu0 0.0
    %168 = vmatpush1.msra.mxu0 0.0
    %169 = vmatprep.subr.mxu0 0.0
    %170 = vmatpush1.msra.mxu0 0.0
    %171 = vmatprep.subr.mxu0 0.0
    %172 = vmatpush1.msra.mxu0 0.0
    %173 = vmatprep.subr.mxu0 0.0
    %174 = vmatpush1.msra.mxu0 0.0
    %175 = vmatprep.subr.mxu0 0.0
    %176 = vmatpush1.msra.mxu0 0.0
    %177 = vmatprep.subr.mxu0 0.0
    %178 = vmatpush1.msra.mxu0 0.0
    %179 = vmatprep.subr.mxu0 0.0
    %180 = vmatpush1.msra.mxu0 0.0
    %181 = vmatprep.subr.mxu0 0.0
    %182 = vmatpush1.msra.mxu0 0.0
    %183 = vmatprep.subr.mxu0 0.0
    %184 = vmatpush1.msra.mxu0 0.0
    %185 = vmatprep.subr.mxu0 0.0
    %186 = vmatpush1.msra.mxu0 0.0
    %187 = vmatprep.subr.mxu0 0.0
    %188 = vmatpush1.msra.mxu0 %v157
    %189 = vmatprep.subr.mxu0 0.0
    %190 = vmatpush1.msra.mxu0 %v15
    %191 = vmatprep.subr.mxu0 0.0
    %192 = vmatpush2.msra.mxu0 0.0
    %193 = vmatprep.subr.mxu0 0.0
    %194 = vmatpush2.msra.mxu0 0.0
    %195 = vmatprep.subr.mxu0 0.0
    %196 = vmatpush2.msra.mxu0 0.0
    %197 = vmatprep.subr.mxu0 0.0
    %198 = vmatpush2.msra.mxu0 0.0
    %199 = vmatprep.subr.mxu0 0.0
    %200 = vmatpush2.msra.mxu0 0.0
    %201 = vmatprep.subr.mxu0 0.0
    %202 = vmatpush2.msra.mxu0 0.0
    %203 = vmatprep.subr.mxu0 0.0
    %204 = vmatpush2.msra.mxu0 0.0
    %205 = vmatprep.subr.mxu0 0.0
    %206 = vmatpush2.msra.mxu0 0.0
    %207 = vmatprep.subr.mxu0 0.0
    %208 = vmatpush2.msra.mxu0 0.0
    %209 = vmatprep.subr.mxu0 0.0
    %210 = vmatpush2.msra.mxu0 0.0
    %211 = vmatprep.subr.mxu0 0.0
    %212 = vmatpush2.msra.mxu0 0.0
    %213 = vmatprep.subr.mxu0 0.0
    %214 = vmatpush2.msra.mxu0 0.0
    %215 = vmatprep.subr.mxu0 0.0
    %216 = vmatpush2.msra.mxu0 0.0
    %217 = vmatprep.subr.mxu0 0.0
    %218 = vmatpush2.msra.mxu0 0.0
    %219 = vmatprep.subr.mxu0 0.0
    %220 = vmatpush2.msra.mxu0 0.0
    %221 = vmatprep.subr.mxu0 0.0
    %222 = vmatpush2.msra.mxu0 0.0
    %223 = vmatprep.mubr.f32.mxu0 0.0
    %224 = vmatmul.mubr.f32.gmra.mxu0 %v146
    %v225 = vpop.f32.mrf.mxu0
    %v226 = vadd.f32 %v127, %v225
    %v227 = vpop.f32.mrf.mxu0
    %228 = vmatprep.mubr.f32.mxu0 0.0
    %229 = vmatmul.mubr.f32.gmra.mxu0 %v149
    %v230 = vpop.f32.mrf.mxu0
    %v231 = vadd.f32 %v132, %v230
    %v232 = vpop.f32.mrf.mxu0
    %233 = vmatprep.mubr.f32.mxu0 0.0
    %234 = vmatmul.mubr.f32.gmra.mxu0 %v152
    %v235 = vpop.f32.mrf.mxu0
    %v236 = vadd.f32 %v137, %v235
    %v237 = vpop.f32.mrf.mxu0
    %238 = vmatprep.mubr.f32.mxu0 0.0
    %239 = vmatmul.mubr.f32.gmra.mxu0 %v155
    %v240 = vpop.f32.mrf.mxu0
    %v241 = vadd.f32 %v142, %v240
    %v242 = vpop.f32.mrf.mxu0
    %243 = vdwg.mxu0
    %244 = vrot.lane.b32.xlu0 %v15, 126
    %v245 = vpop.permute.xlu0 %244
    %246 = vrot.lane.b32.xlu0 %v16, 126
    %v247 = vpop.permute.xlu0 %246
    %250 = vrot.lane.b32.xlu0 %v15, 34
    %v251 = vpop.permute.xlu0 %250
    %252 = vrot.lane.b32.xlu0 %v16, 34
    %v253 = vpop.permute.xlu0 %252
    %vm256 = vcmask 277504
    %v257 = vsel %vm256, %v245, %v251
    %v258 = vsel %vm256, %v247, %v253
    %s259 = scalar_lea.vmem %s0, 64
    %v260 = vld [vmem:[%s259] sm:$0xff]
    %v261 = vld [vmem:[%s259 + $0x8] sm:$0xff]
    %v262 = vld [vmem:[%s259 + $0x10] sm:$0xff]
    %v263 = vld [vmem:[%s259 + $0x18] sm:$0xff]
    %v265 = vsel %vm43, %v260, 0
    %v268 = vsel %vm43, %v261, 0
    %v271 = vsel %vm43, %v262, 0
    %v274 = vsel %vm43, %v263, 0
    %v277 = vsel %vm56, %v258, 0
    %279 = vmatprep.subr.mxu0 0.0
    %280 = vmatpush1.msra.mxu0 0.0
    %281 = vmatprep.subr.mxu0 0.0
    %282 = vmatpush1.msra.mxu0 0.0
    %283 = vmatprep.subr.mxu0 0.0
    %284 = vmatpush1.msra.mxu0 0.0
    %285 = vmatprep.subr.mxu0 0.0
    %286 = vmatpush1.msra.mxu0 0.0
    %287 = vmatprep.subr.mxu0 0.0
    %288 = vmatpush1.msra.mxu0 0.0
    %289 = vmatprep.subr.mxu0 0.0
    %290 = vmatpush1.msra.mxu0 0.0
    %291 = vmatprep.subr.mxu0 0.0
    %292 = vmatpush1.msra.mxu0 0.0
    %293 = vmatprep.subr.mxu0 0.0
    %294 = vmatpush1.msra.mxu0 0.0
    %295 = vmatprep.subr.mxu0 0.0
    %296 = vmatpush1.msra.mxu0 0.0
    %297 = vmatprep.subr.mxu0 0.0
    %298 = vmatpush1.msra.mxu0 0.0
    %299 = vmatprep.subr.mxu0 0.0
    %300 = vmatpush1.msra.mxu0 0.0
    %301 = vmatprep.subr.mxu0 0.0
    %302 = vmatpush1.msra.mxu0 0.0
    %303 = vmatprep.subr.mxu0 0.0
    %304 = vmatpush1.msra.mxu0 0.0
    %305 = vmatprep.subr.mxu0 0.0
    %306 = vmatpush1.msra.mxu0 0.0
    %307 = vmatprep.subr.mxu0 0.0
    %308 = vmatpush1.msra.mxu0 %v277
    %309 = vmatprep.subr.mxu0 0.0
    %310 = vmatpush1.msra.mxu0 %v257
    %311 = vmatprep.subr.mxu0 0.0
    %312 = vmatpush2.msra.mxu0 0.0
    %313 = vmatprep.subr.mxu0 0.0
    %314 = vmatpush2.msra.mxu0 0.0
    %315 = vmatprep.subr.mxu0 0.0
    %316 = vmatpush2.msra.mxu0 0.0
    %317 = vmatprep.subr.mxu0 0.0
    %318 = vmatpush2.msra.mxu0 0.0
    %319 = vmatprep.subr.mxu0 0.0
    %320 = vmatpush2.msra.mxu0 0.0
    %321 = vmatprep.subr.mxu0 0.0
    %322 = vmatpush2.msra.mxu0 0.0
    %323 = vmatprep.subr.mxu0 0.0
    %324 = vmatpush2.msra.mxu0 0.0
    %325 = vmatprep.subr.mxu0 0.0
    %326 = vmatpush2.msra.mxu0 0.0
    %327 = vmatprep.subr.mxu0 0.0
    %328 = vmatpush2.msra.mxu0 0.0
    %329 = vmatprep.subr.mxu0 0.0
    %330 = vmatpush2.msra.mxu0 0.0
    %331 = vmatprep.subr.mxu0 0.0
    %332 = vmatpush2.msra.mxu0 0.0
    %333 = vmatprep.subr.mxu0 0.0
    %334 = vmatpush2.msra.mxu0 0.0
    %335 = vmatprep.subr.mxu0 0.0
    %336 = vmatpush2.msra.mxu0 0.0
    %337 = vmatprep.subr.mxu0 0.0
    %338 = vmatpush2.msra.mxu0 0.0
    %339 = vmatprep.subr.mxu0 0.0
    %340 = vmatpush2.msra.mxu0 0.0
    %341 = vmatprep.subr.mxu0 0.0
    %342 = vmatpush2.msra.mxu0 0.0
    %343 = vmatprep.mubr.f32.mxu0 0.0
    %344 = vmatmul.mubr.f32.gmra.mxu0 %v265
    %v345 = vpop.f32.mrf.mxu0
    %v346 = vadd.f32 0.0, %v345
    %v347 = vpop.f32.mrf.mxu0
    %348 = vmatprep.mubr.f32.mxu0 0.0
    %349 = vmatmul.mubr.f32.gmra.mxu0 %v268
    %v350 = vpop.f32.mrf.mxu0
    %v351 = vadd.f32 0.0, %v350
    %v352 = vpop.f32.mrf.mxu0
    %353 = vmatprep.mubr.f32.mxu0 0.0
    %354 = vmatmul.mubr.f32.gmra.mxu0 %v271
    %v355 = vpop.f32.mrf.mxu0
    %v356 = vadd.f32 0.0, %v355
    %v357 = vpop.f32.mrf.mxu0
    %358 = vmatprep.mubr.f32.mxu0 0.0
    %359 = vmatmul.mubr.f32.gmra.mxu0 %v274
    %v360 = vpop.f32.mrf.mxu0
    %v361 = vadd.f32 0.0, %v360
    %v362 = vpop.f32.mrf.mxu0
    %363 = vdwg.mxu0
    %v364 = vadd.f32 %v226, %v346
    %v365 = vadd.f32 %v231, %v351
    %v366 = vadd.f32 %v236, %v356
    %v367 = vadd.f32 %v241, %v361
    %v368 = vld [vmem:[%s1] sm:$0xff]
    %v369 = vld [vmem:[%s1 + $0x8] sm:$0xff]
    %v370 = vld [vmem:[%s1 + $0x10] sm:$0xff]
    %v371 = vld [vmem:[%s1 + $0x18] sm:$0xff]
    %373 = vset.pattern.permute.xlu0 0
    %374 = vperm.xlu0 %373, %v368
    %v375 = vpop.permute.xlu0 %374
    %378 = vset.pattern.permute.xlu0 0
    %379 = vperm.xlu0 %378, %v369
    %v380 = vpop.permute.xlu0 %379
    %383 = vset.pattern.permute.xlu0 0
    %384 = vperm.xlu0 %383, %v370
    %v385 = vpop.permute.xlu0 %384
    %388 = vset.pattern.permute.xlu0 0
    %389 = vperm.xlu0 %388, %v371
    %v390 = vpop.permute.xlu0 %389
    %v392 = vadd.f32 %v364, %v375
    %v393 = vadd.f32 %v365, %v380
    %v394 = vadd.f32 %v366, %v385
    %v395 = vadd.f32 %v367, %v390
    %v396 = vxor.u32 %v392, 2147483648
    %v397 = vmul.f32 %v396, 1.442695
    %v398 = vpow.pop %v397
    %v399 = vadd.f32 %v398, 1.0
    %v400 = vrcp.pop %v399
    %v401 = vmul.f32 1.0, %v400
    %v402 = vxor.u32 %v393, 2147483648
    %v403 = vmul.f32 %v402, 1.442695
    %v404 = vpow.pop %v403
    %v405 = vadd.f32 %v404, 1.0
    %v406 = vrcp.pop %v405
    %v407 = vmul.f32 1.0, %v406
    %v408 = vmul.f32 %v401, %v395
    %v409 = vadd.f32 %v394, %v408
    %v410 = vtanh.pop %v409
    %v411 = vsub.f32 1.0, %v407
    %v412 = vmul.f32 %v411, %v410
    %v413 = vmul.f32 %v407, %v36
    %v414 = vadd.f32 %v412, %v413
    %vm415 = vcmask 293888
    %416 = vst.msk [vmem:[#allocation2] sm:$0xff] %vm415, %v414
    // Predicated region
    $region14: #{tpu_custom_call.1} parent=1 // pred_check
      _
    $region15: #{tpu_custom_call.1} parent=1 // pred_check_branch
      %418 = sbr.rel (0) target = $region17
    $region16: #{tpu_custom_call.1} parent=1 // pred_region
      %s420 = ssub.s32 128, 128
      %421 = vsyncadd [#allocation3], %s420
      %s423 = sshll.u32 [#allocation2], 4
      %s424 = int_to_ptr.vmem [resolvable:$true] %s423
      %426 = dma.vmem_to_hbm [thread:$0]  %s424, 128, %s3, [#allocation3]
    $region17: #{tpu_custom_call.1} parent=1 // pred_fallthru
      _
    // Predicated region
    $region18: #{tpu_custom_call.1} parent=1 // pred_check
      _
    $region19: #{tpu_custom_call.1} parent=1 // pred_check_branch
      %428 = sbr.rel (0) target = $region21
    $region20: #{tpu_custom_call.1} parent=1 // pred_region
      %429 = dma.done [#allocation3], 128
    $region21: #{tpu_custom_call.1} parent=1 // pred_fallthru
      _
    %430 = vsyncpa [#allocation3], 1

</llo_original>
